<compile_context>
chip_gen: v7x
topology: tpu7x:2x2x1
jax: 0.10.0
libtpu: 0.0.40
codegen_flags: <defaults>
</compile_context>

<pallas_src>
import functools

import jax
import jax.numpy as jnp
from jax.experimental import pallas as pl
from jax.experimental.pallas import tpu as pltpu

_STATS_TM_CAP = 4096  # stats pass streams a single small (c_blk, tm) block


@functools.lru_cache(maxsize=1)
def _tpu_budgets():
    """Per-generation VMEM budgets; conservative (v7x-safe) if query fails."""
    vmem_bytes = 64 * 1024 * 1024
    try:
        info = pltpu.get_tpu_info()
        vmem_bytes = int(getattr(info, "vmem_capacity_bytes", vmem_bytes))
    except Exception:  # CPU trace / interpret / older jax: stay conservative
        pass
    if vmem_bytes >= 100 * 1024 * 1024:
        # v5e / v6e: 128 MiB physical VMEM -> bigger streaming blocks.
        return dict(vmem_limit=96 * 1024 * 1024,
                    norm_budget=40 * 1024 * 1024,
                    stats_budget=48 * 1024 * 1024,
                    tm_cap=4096)
    # v7x (or unknown): 64 MiB per-TC VMEM -> keep headroom for compiler scratch.
    return dict(vmem_limit=48 * 1024 * 1024,
                norm_budget=16 * 1024 * 1024,
                stats_budget=20 * 1024 * 1024,
                tm_cap=2048)


def _choose_tm(hw, c, itemsize, n_streams, budget, cap):
    """Lane-tile width: multiple of 128, double-buffered streams fit `budget`."""
    tm = budget // (2 * n_streams * max(c, 1) * itemsize)
    tm = max(128, (tm // 128) * 128)
    tm = min(tm, cap)
    hw_up = ((hw + 127) // 128) * 128
    return min(tm, hw_up)


def _choose_c_blk(c):
    """Channel block for the stats pass: keeps live chunk accumulators ~32 vregs."""
    if c <= 64:
        return c
    for cb in (64, 32, 16, 8):
        if c % cb == 0:
            return cb
    return c  # odd channel count > 64: full-C fallback (valid, just more vregs)


# ----------------------------- kernels --------------------------------------
def _make_stats_kernel(hw, tm, tiles_per_split, n_tiles, c_blk):
    """Lane-dense (c_blk, 128) partial sum / sum-sq over HW, accumulated in VMEM
    scratch; one lane-reduce at the last HW step -> (c_blk, 1) output block."""
    n_chunks = tm // 128
    ragged = (hw % tm) != 0

    def kernel(x_ref, sum_ref, sumsq_ref, acc_s, acc_ss):
        s_id = pl.program_id(2)
        j = pl.program_id(3)

        @pl.when(j == 0)
        def _():
            acc_s[...] = jnp.zeros_like(acc_s)
            acc_ss[...] = jnp.zeros_like(acc_ss)

        def accumulate(masked):
            if masked:
                # Hoisted out of the chunk loop: iota + tile base computed once.
                lane = jax.lax.broadcasted_iota(jnp.int32, (c_blk, 128), 1)
                base = (s_id * tiles_per_split + j) * tm
            s = None
            ss = None
            for k in range(n_chunks):
                blk = x_ref[:, k * 128:(k + 1) * 128].astype(jnp.float32)
                if masked:
                    blk = jnp.where(base + (k * 128) + lane < hw, blk, 0.0)
                if s is None:
                    s, ss = blk, blk * blk
                else:
                    s = s + blk
                    ss = ss + blk * blk
            acc_s[...] += s
            acc_ss[...] += ss

        if ragged:
            # Masking only runs on the single tail tile; hot tiles stay mask-free.
            is_tail = (s_id * tiles_per_split + j) == (n_tiles - 1)
            pl.when(is_tail)(lambda: accumulate(True))
            pl.when(jnp.logical_not(is_tail))(lambda: accumulate(False))
        else:
            accumulate(False)

        @pl.when(j == tiles_per_split - 1)
        def _():
            # One XLU lane-reduce per output block; cuts HBM writeback ~128x.
            sum_ref[...] = jnp.sum(acc_s[...], axis=-1, keepdims=True)
            sumsq_ref[...] = jnp.sum(acc_ss[...], axis=-1, keepdims=True)

    return kernel


def _norm_kernel(x_ref, xs_ref, scale_ref, shift_ref, y_ref, ys_ref):
    """y = x*scale + shift ; yS = xS*scale   (scale/shift are per-channel (C,1))."""
    scale = scale_ref[...]                               # (C, 1) f32, VMEM resident
    shift = shift_ref[...]
    y_ref[...] = (x_ref[...].astype(jnp.float32) * scale + shift).astype(y_ref.dtype)
    ys_ref[...] = (xs_ref[...].astype(jnp.float32) * scale).astype(ys_ref.dtype)


# --------------------------- pallas wrappers ---------------------------------
def _batch_stats(x3, tm, c_blk, vmem_limit):
    """x3: (N, C, HW) -> (sum, sumsq) partials of shape (N, split, C, 1), f32."""
    N, C, HW = x3.shape
    n_tiles = pl.cdiv(HW, tm)
    # Size-2 "parallel" HW split so a second TensorCore (v7x megacore) has work
    # even when N is small; falls back to 1 when the tile count is odd.
    split = 2 if (n_tiles >= 2 and n_tiles % 2 == 0) else 1
    tiles_per_split = n_tiles // split
    n_cblk = C // c_blk

    out_sds = jax.ShapeDtypeStruct((N, split, C, 1), jnp.float32)
    in_spec = pl.BlockSpec((None, c_blk, tm),
                           lambda n, c, s, j: (n, c, s * tiles_per_split + j))
    out_spec = pl.BlockSpec((None, None, c_blk, 1),
                            lambda n, c, s, j: (n, s, c, 0))
    return pl.pallas_call(
        _make_stats_kernel(HW, tm, tiles_per_split, n_tiles, c_blk),
        out_shape=(out_sds, out_sds),
        grid_spec=pltpu.PrefetchScalarGridSpec(
            num_scalar_prefetch=0,
            grid=(N, n_cblk, split, tiles_per_split),
            in_specs=[in_spec],
            out_specs=(out_spec, out_spec),
            scratch_shapes=[pltpu.VMEM((c_blk, 128), jnp.float32),
                            pltpu.VMEM((c_blk, 128), jnp.float32)]),
        compiler_params=pltpu.CompilerParams(
            dimension_semantics=("parallel", "parallel", "parallel", "arbitrary"),
            vmem_limit_bytes=vmem_limit),
    )(x3)


def _normalize(x3, xs3, scale, shift, tm, vmem_limit):
    N, C, HW = x3.shape
    n_tiles = pl.cdiv(HW, tm)
    data_spec = pl.BlockSpec((None, C, tm), lambda n, j: (n, 0, j))
    param_spec = pl.BlockSpec(memory_space=pltpu.MemorySpace.VMEM)  # resident
    return pl.pallas_call(
        _norm_kernel,
        out_shape=(jax.ShapeDtypeStruct((N, C, HW), x3.dtype),
                   jax.ShapeDtypeStruct((N, C, HW), xs3.dtype)),
        grid_spec=pltpu.PrefetchScalarGridSpec(
            num_scalar_prefetch=0,
            grid=(N, n_tiles),
            in_specs=[data_spec, data_spec, param_spec, param_spec],
            out_specs=(data_spec, data_spec)),
        compiler_params=pltpu.CompilerParams(
            dimension_semantics=("parallel", "parallel"),
            vmem_limit_bytes=vmem_limit),
    )(x3, xs3, scale, shift)


# ------------------------------ forward ---------------------------------------
@functools.partial(jax.jit, static_argnames=("training", "momentum", "eps"))
def sbatchnorm2d_forward(x, xS, running_mean, running_var, weight, bias,
                         training=True, momentum=0.1, eps=1e-5):
    """Functional SBatchNorm2d forward. Inputs x, xS are NCHW."""
    N, C, H, W = x.shape
    HW = H * W
    M = N * HW
    itemsize = jnp.dtype(x.dtype).itemsize
    budgets = _tpu_budgets()

    x3 = x.reshape(N, C, HW)          # free reshape, NCHW layout preserved
    xs3 = xS.reshape(N, C, HW)

    if training:
        c_blk = _choose_c_blk(C)
        tm_stats = _choose_tm(HW, c_blk, itemsize, 1,
                              budgets["stats_budget"], _STATS_TM_CAP)
        sum_p, sumsq_p = _batch_stats(x3, tm_stats, c_blk, budgets["vmem_limit"])
        s = jnp.sum(sum_p, axis=(0, 1, 3))                     # (C,)
        ss = jnp.sum(sumsq_p, axis=(0, 1, 3))                  # (C,)
        mean = s / M
        # TODO(synk): E[x^2]-E[x]^2 in f32 can lose precision when |mean|>>std;
        #             a centered second pass would be more robust.
        var = jnp.maximum(ss / M - mean * mean, 0.0)           # biased var (norm)
        var_unbiased = var * (M / (M - 1)) if M > 1 else var
        new_rm = (1.0 - momentum) * running_mean + momentum * mean
        new_rv = (1.0 - momentum) * running_var + momentum * var_unbiased
    else:
        mean, var = running_mean, running_var
        new_rm, new_rv = running_mean, running_var

    inv_std = jax.lax.rsqrt(var.astype(jnp.float32) + eps)
    scale = (weight.astype(jnp.float32) * inv_std).reshape(C, 1)
    shift = (bias.astype(jnp.float32)
             - mean.astype(jnp.float32) * weight.astype(jnp.float32) * inv_std
             ).reshape(C, 1)

    tm_norm = _choose_tm(HW, C, itemsize, 4,
                         budgets["norm_budget"], budgets["tm_cap"])
    y3, ys3 = _normalize(x3, xs3, scale, shift, tm_norm, budgets["vmem_limit"])
    y = y3.reshape(N, C, H, W)
    yS = ys3.reshape(N, C, H, W)
    return (y, yS), (new_rm, new_rv)


# ------------------------------ main ------------------------------------------
if __name__ == "__main__":
    key = jax.random.PRNGKey(0)
    kx, ks, kw, kb = jax.random.split(key, 4)

    N, C, H, W = 2, 4, 16, 16
    eps, momentum = 1e-5, 0.1

    x = jax.random.normal(kx, (N, C, H, W), jnp.float32) * 2.0 + 0.5
    xS = jax.random.normal(ks, (N, C, H, W), jnp.float32)

    # deterministic parameter init (nn.BatchNorm2d shapes: all (C,))
    weight = jax.random.normal(kw, (C,), jnp.float32) * 0.1 + 1.0
    bias = jax.random.normal(kb, (C,), jnp.float32) * 0.1
    running_mean = jnp.zeros((C,), jnp.float32)
    running_var = jnp.ones((C,), jnp.float32)

    (y, yS), (new_rm, new_rv) = sbatchnorm2d_forward(
        x, xS, running_mean, running_var, weight, bias,
        training=True, momentum=momentum, eps=eps)
    jax.block_until_ready((y, yS, new_rm, new_rv))

    # plain-JAX reference check
    mean_ref = jnp.mean(x, axis=(0, 2, 3))
    var_ref = jnp.mean((x - mean_ref.reshape(1, C, 1, 1)) ** 2, axis=(0, 2, 3))
    inv = 1.0 / jnp.sqrt(var_ref + eps)
    y_ref = (x - mean_ref.reshape(1, C, 1, 1)) * (weight * inv).reshape(1, C, 1, 1) \
            + bias.reshape(1, C, 1, 1)
    yS_ref = xS * (weight * inv).reshape(1, C, 1, 1)

    M = N * H * W
    rm_ref = (1.0 - momentum) * running_mean + momentum * mean_ref
    rv_ref = (1.0 - momentum) * running_var + momentum * (var_ref * M / (M - 1))

    assert jnp.allclose(y, y_ref, atol=1e-4, rtol=1e-4)
    assert jnp.allclose(yS, yS_ref, atol=1e-4, rtol=1e-4)
    assert jnp.allclose(new_rm, rm_ref, atol=1e-5, rtol=1e-5)
    assert jnp.allclose(new_rv, rv_ref, atol=1e-5, rtol=1e-5)

    print("KERNEL_OK")
</pallas_src>

<mosaic_0001>
module attributes {stable_mosaic.version = 11 : i64} {
  func.func @kernel(%arg0: i32, %arg1: i32, %arg2: i32, %arg3: i32, %arg4: memref<1x4x256xf32, #tpu.memory_space<vmem>>, %arg5: memref<1x1x4x1xf32, #tpu.memory_space<vmem>>, %arg6: memref<1x1x4x1xf32, #tpu.memory_space<vmem>>, %arg7: memref<4x128xf32, #tpu.memory_space<vmem>>, %arg8: memref<4x128xf32, #tpu.memory_space<vmem>>) attributes {dimension_semantics = [#tpu.dimension_semantics<parallel>, #tpu.dimension_semantics<parallel>, #tpu.dimension_semantics<parallel>, #tpu.dimension_semantics<arbitrary>], iteration_bounds = array<i64: 2, 1, 1, 1>, scalar_prefetch = 0 : i64, scratch_operands = 2 : i64, tpu.core_type = #tpu.core_type<tc>, window_params = [{transform_indices = @transform_0, window_bounds = array<i64: 1, 4, 256>}, {transform_indices = @transform_1, window_bounds = array<i64: 1, 1, 4, 1>}, {transform_indices = @transform_2, window_bounds = array<i64: 1, 1, 4, 1>}]} {
    %c0_i32 = arith.constant 0 : i32
    %0 = arith.cmpi eq, %arg3, %c0_i32 : i32
    %1 = arith.extui %0 : i1 to i32
    %c0_i32_0 = arith.constant 0 : i32
    %2 = arith.cmpi ne, %1, %c0_i32_0 : i32
    scf.if %2 {
      %cst = arith.constant 0.000000e+00 : f32
      %20 = vector.broadcast %cst : f32 to vector<4x128xf32>
      %c0_15 = arith.constant 0 : index
      %c0_16 = arith.constant 0 : index
      %21 = vector.load %arg7[%c0_15, %c0_16] : memref<4x128xf32, #tpu.memory_space<vmem>>, vector<4x128xf32>
      tpu.vector_store %arg7[%c0_15, %c0_16], %20 {strides = array<i32>} : memref<4x128xf32, #tpu.memory_space<vmem>>, vector<4x128xf32>,
      %cst_17 = arith.constant 0.000000e+00 : f32
      %22 = vector.broadcast %cst_17 : f32 to vector<4x128xf32>
      %c0_18 = arith.constant 0 : index
      %c0_19 = arith.constant 0 : index
      %23 = vector.load %arg8[%c0_18, %c0_19] : memref<4x128xf32, #tpu.memory_space<vmem>>, vector<4x128xf32>
      tpu.vector_store %arg8[%c0_18, %c0_19], %22 {strides = array<i32>} : memref<4x128xf32, #tpu.memory_space<vmem>>, vector<4x128xf32>,
    } else {
    }
    %c0 = arith.constant 0 : index
    %c0_1 = arith.constant 0 : index
    %c0_2 = arith.constant 0 : index
    %3 = vector.load %arg4[%c0, %c0_1, %c0_2] : memref<1x4x256xf32, #tpu.memory_space<vmem>>, vector<1x4x128xf32>
    %4 = vector.shape_cast %3 : vector<1x4x128xf32> to vector<4x128xf32>
    %5 = arith.mulf %4, %4 : vector<4x128xf32>
    %c0_3 = arith.constant 0 : index
    %c0_4 = arith.constant 0 : index
    %c128 = arith.constant 128 : index
    %6 = vector.load %arg4[%c0_3, %c0_4, %c128] : memref<1x4x256xf32, #tpu.memory_space<vmem>>, vector<1x4x128xf32>
    %7 = vector.shape_cast %6 : vector<1x4x128xf32> to vector<4x128xf32>
    %8 = arith.addf %4, %7 : vector<4x128xf32>
    %9 = arith.mulf %7, %7 : vector<4x128xf32>
    %10 = arith.addf %5, %9 : vector<4x128xf32>
    %c0_5 = arith.constant 0 : index
    %c0_6 = arith.constant 0 : index
    %11 = vector.load %arg7[%c0_5, %c0_6] : memref<4x128xf32, #tpu.memory_space<vmem>>, vector<4x128xf32>
    %12 = arith.addf %11, %8 : vector<4x128xf32>
    %c0_7 = arith.constant 0 : index
    %c0_8 = arith.constant 0 : index
    %13 = vector.load %arg7[%c0_7, %c0_8] : memref<4x128xf32, #tpu.memory_space<vmem>>, vector<4x128xf32>
    tpu.vector_store %arg7[%c0_7, %c0_8], %12 {strides = array<i32>} : memref<4x128xf32, #tpu.memory_space<vmem>>, vector<4x128xf32>,
    %c0_9 = arith.constant 0 : index
    %c0_10 = arith.constant 0 : index
    %14 = vector.load %arg8[%c0_9, %c0_10] : memref<4x128xf32, #tpu.memory_space<vmem>>, vector<4x128xf32>
    %15 = arith.addf %14, %10 : vector<4x128xf32>
    %c0_11 = arith.constant 0 : index
    %c0_12 = arith.constant 0 : index
    %16 = vector.load %arg8[%c0_11, %c0_12] : memref<4x128xf32, #tpu.memory_space<vmem>>, vector<4x128xf32>
    tpu.vector_store %arg8[%c0_11, %c0_12], %15 {strides = array<i32>} : memref<4x128xf32, #tpu.memory_space<vmem>>, vector<4x128xf32>,
    %c0_i32_13 = arith.constant 0 : i32
    %17 = arith.cmpi eq, %arg3, %c0_i32_13 : i32
    %18 = arith.extui %17 : i1 to i32
    %c0_i32_14 = arith.constant 0 : i32
    %19 = arith.cmpi ne, %18, %c0_i32_14 : i32
    scf.if %19 {
      %c0_15 = arith.constant 0 : index
      %c0_16 = arith.constant 0 : index
      %20 = vector.load %arg7[%c0_15, %c0_16] : memref<4x128xf32, #tpu.memory_space<vmem>>, vector<4x128xf32>
      %cst = arith.constant dense<0.000000e+00> : vector<4xf32>
      %21 = vector.multi_reduction <add>, %20, %cst [1] : vector<4x128xf32> to vector<4xf32>
      %22 = vector.shape_cast %21 : vector<4xf32> to vector<4x1xf32>
      %c0_17 = arith.constant 0 : index
      %c0_18 = arith.constant 0 : index
      %c0_19 = arith.constant 0 : index
      %c0_20 = arith.constant 0 : index
      %23 = vector.load %arg5[%c0_17, %c0_18, %c0_19, %c0_20] : memref<1x1x4x1xf32, #tpu.memory_space<vmem>>, vector<1x1x4x1xf32>
      %24 = vector.shape_cast %23 : vector<1x1x4x1xf32> to vector<4x1xf32>
      %25 = vector.shape_cast %22 : vector<4x1xf32> to vector<1x1x4x1xf32>
      tpu.vector_store %arg5[%c0_17, %c0_18, %c0_19, %c0_20], %25 {strides = array<i32>} : memref<1x1x4x1xf32, #tpu.memory_space<vmem>>, vector<1x1x4x1xf32>,
      %c0_21 = arith.constant 0 : index
      %c0_22 = arith.constant 0 : index
      %26 = vector.load %arg8[%c0_21, %c0_22] : memref<4x128xf32, #tpu.memory_space<vmem>>, vector<4x128xf32>
      %cst_23 = arith.constant dense<0.000000e+00> : vector<4xf32>
      %27 = vector.multi_reduction <add>, %26, %cst_23 [1] : vector<4x128xf32> to vector<4xf32>
      %28 = vector.shape_cast %27 : vector<4xf32> to vector<4x1xf32>
      %c0_24 = arith.constant 0 : index
      %c0_25 = arith.constant 0 : index
      %c0_26 = arith.constant 0 : index
      %c0_27 = arith.constant 0 : index
      %29 = vector.load %arg6[%c0_24, %c0_25, %c0_26, %c0_27] : memref<1x1x4x1xf32, #tpu.memory_space<vmem>>, vector<1x1x4x1xf32>
      %30 = vector.shape_cast %29 : vector<1x1x4x1xf32> to vector<4x1xf32>
      %31 = vector.shape_cast %28 : vector<4x1xf32> to vector<1x1x4x1xf32>
      tpu.vector_store %arg6[%c0_24, %c0_25, %c0_26, %c0_27], %31 {strides = array<i32>} : memref<1x1x4x1xf32, #tpu.memory_space<vmem>>, vector<1x1x4x1xf32>,
    } else {
    }
    return
  }
  func.func @transform_0(%arg0: i32, %arg1: i32, %arg2: i32, %arg3: i32) -> (i32, i32, i32) {
    %c1_i32 = arith.constant 1 : i32
    %0 = arith.muli %arg2, %c1_i32 : i32
    %1 = arith.addi %0, %arg3 : i32
    %c0_i32 = arith.constant 0 : i32
    return %arg0, %arg1, %1 : i32, i32, i32
  }
  func.func @transform_1(%arg0: i32, %arg1: i32, %arg2: i32, %arg3: i32) -> (i32, i32, i32, i32) {
    %c0_i32 = arith.constant 0 : i32
    %c0_i32_0 = arith.constant 0 : i32
    return %arg0, %arg2, %arg1, %c0_i32 : i32, i32, i32, i32
  }
  func.func @transform_2(%arg0: i32, %arg1: i32, %arg2: i32, %arg3: i32) -> (i32, i32, i32, i32) {
    %c0_i32 = arith.constant 0 : i32
    %c0_i32_0 = arith.constant 0 : i32
    return %arg0, %arg2, %arg1, %c0_i32 : i32, i32, i32, i32
  }
}

module attributes {stable_mosaic.version = 11 : i64} {
  func.func @_norm_kernel(%arg0: i32, %arg1: i32, %arg2: memref<1x4x256xf32, #tpu.memory_space<vmem>>, %arg3: memref<1x4x256xf32, #tpu.memory_space<vmem>>, %arg4: memref<4x1xf32, #tpu.memory_space<vmem>>, %arg5: memref<4x1xf32, #tpu.memory_space<vmem>>, %arg6: memref<1x4x256xf32, #tpu.memory_space<vmem>>, %arg7: memref<1x4x256xf32, #tpu.memory_space<vmem>>) attributes {dimension_semantics = [#tpu.dimension_semantics<parallel>, #tpu.dimension_semantics<parallel>], iteration_bounds = array<i64: 2, 1>, scalar_prefetch = 0 : i64, scratch_operands = 0 : i64, tpu.core_type = #tpu.core_type<tc>, window_params = [{transform_indices = @transform_0, window_bounds = array<i64: 1, 4, 256>}, {transform_indices = @transform_1, window_bounds = array<i64: 1, 4, 256>}, {pipeline_mode = #tpu.pipeline_mode<synchronous>, transform_indices = @transform_2, window_bounds = array<i64: 4, 1>}, {pipeline_mode = #tpu.pipeline_mode<synchronous>, transform_indices = @transform_3, window_bounds = array<i64: 4, 1>}, {transform_indices = @transform_4, window_bounds = array<i64: 1, 4, 256>}, {transform_indices = @transform_5, window_bounds = array<i64: 1, 4, 256>}]} {
    %c0 = arith.constant 0 : index
    %c0_0 = arith.constant 0 : index
    %0 = vector.load %arg4[%c0, %c0_0] : memref<4x1xf32, #tpu.memory_space<vmem>>, vector<4x1xf32>
    %c0_1 = arith.constant 0 : index
    %c0_2 = arith.constant 0 : index
    %1 = vector.load %arg5[%c0_1, %c0_2] : memref<4x1xf32, #tpu.memory_space<vmem>>, vector<4x1xf32>
    %c0_3 = arith.constant 0 : index
    %c0_4 = arith.constant 0 : index
    %c0_5 = arith.constant 0 : index
    %2 = vector.load %arg2[%c0_3, %c0_4, %c0_5] : memref<1x4x256xf32, #tpu.memory_space<vmem>>, vector<1x4x256xf32>
    %3 = vector.shape_cast %2 : vector<1x4x256xf32> to vector<4x256xf32>
    %4 = vector.broadcast %0 : vector<4x1xf32> to vector<4x256xf32>
    %5 = arith.mulf %3, %4 : vector<4x256xf32>
    %6 = vector.broadcast %1 : vector<4x1xf32> to vector<4x256xf32>
    %7 = arith.addf %5, %6 : vector<4x256xf32>
    %c0_6 = arith.constant 0 : index
    %c0_7 = arith.constant 0 : index
    %c0_8 = arith.constant 0 : index
    %8 = vector.load %arg6[%c0_6, %c0_7, %c0_8] : memref<1x4x256xf32, #tpu.memory_space<vmem>>, vector<1x4x256xf32>
    %9 = vector.shape_cast %8 : vector<1x4x256xf32> to vector<4x256xf32>
    %10 = vector.shape_cast %7 : vector<4x256xf32> to vector<1x4x256xf32>
    tpu.vector_store %arg6[%c0_6, %c0_7, %c0_8], %10 {strides = array<i32>} : memref<1x4x256xf32, #tpu.memory_space<vmem>>, vector<1x4x256xf32>,
    %c0_9 = arith.constant 0 : index
    %c0_10 = arith.constant 0 : index
    %c0_11 = arith.constant 0 : index
    %11 = vector.load %arg3[%c0_9, %c0_10, %c0_11] : memref<1x4x256xf32, #tpu.memory_space<vmem>>, vector<1x4x256xf32>
    %12 = vector.shape_cast %11 : vector<1x4x256xf32> to vector<4x256xf32>
    %13 = vector.broadcast %0 : vector<4x1xf32> to vector<4x256xf32>
    %14 = arith.mulf %12, %13 : vector<4x256xf32>
    %c0_12 = arith.constant 0 : index
    %c0_13 = arith.constant 0 : index
    %c0_14 = arith.constant 0 : index
    %15 = vector.load %arg7[%c0_12, %c0_13, %c0_14] : memref<1x4x256xf32, #tpu.memory_space<vmem>>, vector<1x4x256xf32>
    %16 = vector.shape_cast %15 : vector<1x4x256xf32> to vector<4x256xf32>
    %17 = vector.shape_cast %14 : vector<4x256xf32> to vector<1x4x256xf32>
    tpu.vector_store %arg7[%c0_12, %c0_13, %c0_14], %17 {strides = array<i32>} : memref<1x4x256xf32, #tpu.memory_space<vmem>>, vector<1x4x256xf32>,
    return
  }
  func.func @transform_0(%arg0: i32, %arg1: i32) -> (i32, i32, i32) {
    %c0_i32 = arith.constant 0 : i32
    %c0_i32_0 = arith.constant 0 : i32
    return %arg0, %c0_i32, %arg1 : i32, i32, i32
  }
  func.func @transform_1(%arg0: i32, %arg1: i32) -> (i32, i32, i32) {
    %c0_i32 = arith.constant 0 : i32
    %c0_i32_0 = arith.constant 0 : i32
    return %arg0, %c0_i32, %arg1 : i32, i32, i32
  }
  func.func @transform_2(%arg0: i32, %arg1: i32) -> (i32, i32) {
    %c0_i32 = arith.constant 0 : i32
    %c0_i32_0 = arith.constant 0 : i32
    %c0_i32_1 = arith.constant 0 : i32
    return %c0_i32, %c0_i32_0 : i32, i32
  }
  func.func @transform_3(%arg0: i32, %arg1: i32) -> (i32, i32) {
    %c0_i32 = arith.constant 0 : i32
    %c0_i32_0 = arith.constant 0 : i32
    %c0_i32_1 = arith.constant 0 : i32
    return %c0_i32, %c0_i32_0 : i32, i32
  }
  func.func @transform_4(%arg0: i32, %arg1: i32) -> (i32, i32, i32) {
    %c0_i32 = arith.constant 0 : i32
    %c0_i32_0 = arith.constant 0 : i32
    return %arg0, %c0_i32, %arg1 : i32, i32, i32
  }
  func.func @transform_5(%arg0: i32, %arg1: i32) -> (i32, i32, i32) {
    %c0_i32 = arith.constant 0 : i32
    %c0_i32_0 = arith.constant 0 : i32
    return %arg0, %c0_i32, %arg1 : i32, i32, i32
  }
}

</mosaic_0001>

<llo_original>
// kernel: sbatchnorm2d_forward.2
$region0: #{sbatchnorm2d_forward.2}
  #allocation0 [shape = 'u32[]', space=smem, size = 0x4, offset = 0x4, fixed_abs, tag = 'smem constant byte address 0x4 - core index']
  #allocation1 [shape = 'u32[144,128]{1,0:T(1,128)}', space=vmem, size = 0x12000, scoped, tag = 'internal scratch']
  #allocation2 [shape = 'f32[4,128]{1,0:T(4,128)}', space=vmem, size = 0x800, scoped, tag = 'scratch operand']
  #allocation3 [shape = 'f32[4,128]{1,0:T(4,128)}', space=vmem, size = 0x800, scoped, tag = 'scratch operand']
  %s0 = inlined_call_operand.vmem [shape: f32[2,4,256], index: 0, kind: input, shape index: {}]
  %s1 = inlined_call_operand.vmem [shape: f32[2,1,4,1], index: 1, kind: output, shape index: {0}]
  %s2 = inlined_call_operand.vmem [shape: f32[2,1,4,1], index: 2, kind: output, shape index: {1}]
  %3 = xla_tuple %s1, %s2
  %s4 = sld [smem:[#allocation0]]
  $region53: #{sbatchnorm2d_forward.2} parent=0
    _
  %s6 = ssub.s32 1, %s4
  %s7 = scalar_select 0, %s6, %s4
  loop: start=0, step=1, limit=4
  $region2: #{sbatchnorm2d_forward.2} parent=0 // loop_pre_header
    _
  $region3: #{sbatchnorm2d_forward.2} parent=0 // loop_header
    %s9 = sphi 0, %s13
    %p10 = scmp.ge.s32.totalorder %s9, 4
    %s16 = sphi 0, %s42
    %s17 = sphi 0, %s38
    %s18 = sphi 0, %s34
    %s19 = sphi 0, %s30
    %s20 = sphi 0, %s16
    %s21 = sphi 0, %s17
    %s22 = sphi 0, %s18
    %s23 = sphi 0, %s19
    %s24 = sphi 0, %s20
    %s25 = sphi 0, %s21
    %s26 = sphi 0, %s22
    %s27 = sphi 0, %s23
    %s51 = sphi 0, %s53
    %s54 = sphi 0, %s51
    %s55 = sphi 0, %s54
    %s71 = sphi 0, %s55
    %s81 = sphi 0, %s83
    %s84 = sphi 0, %s81
    %s85 = sphi 0, %s84
    %s101 = sphi 0, %s85
    %s111 = sphi 0, %s113
    %s114 = sphi 0, %s111
    %s115 = sphi 0, %s114
    %s131 = sphi 0, %s115
  $region4: #{sbatchnorm2d_forward.2} parent=0 // loop_header_branch
    %12 = sbr.rel (%p10) target = $region8
  $region5: #{sbatchnorm2d_forward.2} parent=0 // loop_body
    %s14 = ssub.s32 %s9, 1
    %s15 = ssub.s32 %s9, 2
    %s28 = sadd.s32 1, %s19
    %p29 = scmp.ge.s32.totalorder %s28, 1
    %s30 = scalar_select %p29, 0, %s28
    %s31 = sadd.s32 1, %s18
    %s32 = scalar_select %p29, %s31, %s18
    %p33 = scmp.ge.s32.totalorder %s32, 1
    %s34 = scalar_select %p33, 0, %s32
    %s35 = sadd.s32 1, %s17
    %s36 = scalar_select %p33, %s35, %s17
    %p37 = scmp.ge.s32.totalorder %s36, 1
    %s38 = scalar_select %p37, 0, %s36
    %s39 = sadd.s32 1, %s16
    %s40 = scalar_select %p37, %s39, %s16
    %p41 = scmp.ge.s32.totalorder %s40, 2
    %s42 = scalar_select %p41, 0, %s40
    %s43 = sadd.s32 %s18, %s19
    %s44 = sadd.s32 %s34, %s30
    %s45 = ssub.s32 %s16, %s42
    %s46 = ssub.s32 %s17, %s38
    %s47 = sor.u32 %s45, %s46
    %s48 = ssub.s32 %s43, %s44
    %s49 = sor.u32 %s47, %s48
    %p50 = scmp.eq.s32.totalorder %s49, 0
    %s52 = sadd.s32 %s51, 1
    %s53 = scalar_select %p50, %s51, %s52
    %p56 = pneg %p50
    %p57 = scmp.eq.s32.totalorder %s9, 1
    %p58 = por %p56, %p57
    %p59 = scmp.ne.s32.totalorder %s51, %s54
    %p60 = scmp.eq.s32.totalorder %s9, 0
    %p61 = por %p59, %p60
    %p62 = scmp.ne.s32.totalorder %s51, %s54
    %p63 = scmp.eq.s32.totalorder %s14, 1
    %p64 = por %p62, %p63
    %p65 = scmp.ne.s32.totalorder %s54, %s55
    %p66 = scmp.eq.s32.totalorder %s14, 0
    %p67 = por %p65, %p66
    %p68 = scmp.ne.s32.totalorder %s54, %s55
    %p69 = scmp.eq.s32.totalorder %s15, 1
    %p70 = por %p68, %p69
    %p72 = scmp.ne.s32.totalorder %s55, %s71
    %p73 = scmp.eq.s32.totalorder %s15, 0
    %p74 = por %p72, %p73
    %s75 = ssub.s32 %s16, %s42
    %s76 = ssub.s32 %s18, %s34
    %s77 = sor.u32 %s75, %s76
    %s78 = ssub.s32 %s17, %s38
    %s79 = sor.u32 %s77, %s78
    %p80 = scmp.eq.s32.totalorder %s79, 0
    %s82 = sadd.s32 %s81, 1
    %s83 = scalar_select %p80, %s81, %s82
    %p86 = pneg %p80
    %p87 = scmp.eq.s32.totalorder %s9, 1
    %p88 = por %p86, %p87
    %p89 = scmp.ne.s32.totalorder %s81, %s84
    %p90 = scmp.eq.s32.totalorder %s9, 0
    %p91 = por %p89, %p90
    %p92 = scmp.ne.s32.totalorder %s81, %s84
    %p93 = scmp.eq.s32.totalorder %s14, 1
    %p94 = por %p92, %p93
    %p95 = scmp.ne.s32.totalorder %s84, %s85
    %p96 = scmp.eq.s32.totalorder %s14, 0
    %p97 = por %p95, %p96
    %p98 = scmp.ne.s32.totalorder %s84, %s85
    %p99 = scmp.eq.s32.totalorder %s15, 1
    %p100 = por %p98, %p99
    %p102 = scmp.ne.s32.totalorder %s85, %s101
    %p103 = scmp.eq.s32.totalorder %s15, 0
    %p104 = por %p102, %p103
    %s105 = ssub.s32 %s16, %s42
    %s106 = ssub.s32 %s18, %s34
    %s107 = sor.u32 %s105, %s106
    %s108 = ssub.s32 %s17, %s38
    %s109 = sor.u32 %s107, %s108
    %p110 = scmp.eq.s32.totalorder %s109, 0
    %s112 = sadd.s32 %s111, 1
    %s113 = scalar_select %p110, %s111, %s112
    %p116 = pneg %p110
    %p117 = scmp.eq.s32.totalorder %s9, 1
    %p118 = por %p116, %p117
    %p119 = scmp.ne.s32.totalorder %s111, %s114
    %p120 = scmp.eq.s32.totalorder %s9, 0
    %p121 = por %p119, %p120
    %p122 = scmp.ne.s32.totalorder %s111, %s114
    %p123 = scmp.eq.s32.totalorder %s14, 1
    %p124 = por %p122, %p123
    %p125 = scmp.ne.s32.totalorder %s114, %s115
    %p126 = scmp.eq.s32.totalorder %s14, 0
    %p127 = por %p125, %p126
    %p128 = scmp.ne.s32.totalorder %s114, %s115
    %p129 = scmp.eq.s32.totalorder %s15, 1
    %p130 = por %p128, %p129
    %p132 = scmp.ne.s32.totalorder %s115, %s131
    %p133 = scmp.eq.s32.totalorder %s15, 0
    %p134 = por %p132, %p133
    %p135 = scmp.le.s32.totalorder 1, %s9
    %p136 = scmp.lt.s32.totalorder %s9, 3
    %p137 = pnand %p135, %p136
    %p138 = pneg %p137
    // Predicated region
    $region9: #{sbatchnorm2d_forward.2} parent=5 // pred_check
      _
    $region10: #{sbatchnorm2d_forward.2} parent=5 // pred_check_branch
      %140 = sbr.rel (%p137) target = $region12
    $region11: #{sbatchnorm2d_forward.2} parent=5 // pred_region
      %s141 = ssub.s32 %s9, 1
    $region12: #{sbatchnorm2d_forward.2} parent=5 // pred_fallthru
      _
    %p142 = scmp.lt.s32.totalorder %s9, 2
    // Predicated region
    $region13: #{sbatchnorm2d_forward.2} parent=5 // pred_check
      %p143 = pneg %p142
    $region14: #{sbatchnorm2d_forward.2} parent=5 // pred_check_branch
      %145 = sbr.rel (%p143) target = $region16
    $region15: #{sbatchnorm2d_forward.2} parent=5 // pred_region
      // Predicated region
      $region17: #{sbatchnorm2d_forward.2} parent=15 // pred_check
        %p146 = pneg %p61
      $region18: #{sbatchnorm2d_forward.2} parent=15 // pred_check_branch
        %148 = sbr.rel (%p146) target = $region20
      $region19: #{sbatchnorm2d_forward.2} parent=15 // pred_region
        %s149 = sadd.s32 %s18, %s19
        %s150 = smul.u32 2, %s149
        %p151 = scmp.lt.s32.totalorder %s16, 1
        %s152 = scalar_select %p151, %s16, 1
        %p153 = scmp.lt.s32.totalorder %s17, 0
        %s154 = scalar_select %p153, %s17, 0
        %p155 = scmp.lt.s32.totalorder %s150, 1
        %s156 = scalar_select %p155, %s150, 1
        %s157 = smul.addr %s154, 2
        %s158 = sadd.s32 %s156, %s157
        %s159 = smul.addr %s152, 2
        %s160 = sadd.s32 %s158, %s159
        %s161 = smul.addr %s160, 4
        %s162 = scalar_lea.vmem %s0, %s161
        %s163 = sadd.s32 %s18, %s19
        %s164 = smul.u32 2, %s163
      $region20: #{sbatchnorm2d_forward.2} parent=15 // pred_fallthru
        _
    $region16: #{sbatchnorm2d_forward.2} parent=5 // pred_fallthru
      _
    %p165 = scmp.le.s32.totalorder 1, %s9
    %p166 = scmp.lt.s32.totalorder %s9, 3
    %p167 = pnand %p165, %p166
    %p168 = pneg %p167
    // Predicated region
    $region21: #{sbatchnorm2d_forward.2} parent=5 // pred_check
      _
    $region22: #{sbatchnorm2d_forward.2} parent=5 // pred_check_branch
      %170 = sbr.rel (%p167) target = $region24
    $region23: #{sbatchnorm2d_forward.2} parent=5 // pred_region
      %s171 = ssub.s32 %s9, 1
      %s172 = sadd.s32 %s22, %s23
      %s173 = smul.u32 2, %s172
      %p174 = scmp.lt.s32.totalorder %s20, 1
      %s175 = scalar_select %p174, %s20, 1
      %p176 = scmp.lt.s32.totalorder %s21, 0
      %s177 = scalar_select %p176, %s21, 0
      %p178 = scmp.lt.s32.totalorder %s173, 1
      %s179 = scalar_select %p178, %s173, 1
      %s180 = smul.addr %s177, 2
      %s181 = sadd.s32 %s179, %s180
      %s182 = smul.addr %s175, 2
      %s183 = sadd.s32 %s181, %s182
      %s184 = smul.addr %s183, 4
      %s185 = scalar_lea.vmem %s0, %s184
      %p186 = pneg %p67
      %p187 = pneg %p64
      %p188 = pneg %p97
      %p189 = pneg %p94
      %p190 = scmp.lt.s32.totalorder %s20, 1
      %s191 = scalar_select %p190, %s20, 1
      %p192 = scmp.lt.s32.totalorder %s22, 0
      %s193 = scalar_select %p192, %s22, 0
      %p194 = scmp.lt.s32.totalorder %s21, 0
      %s195 = scalar_select %p194, %s21, 0
      %s196 = sadd.s32 %s195, %s193
      %s197 = sadd.s32 %s196, %s191
      %s198 = smul.addr %s197, 4
      %s199 = scalar_lea.vmem %s1, %s198
      %p200 = pneg %p127
      %p201 = pneg %p124
      %p202 = scmp.lt.s32.totalorder %s20, 1
      %s203 = scalar_select %p202, %s20, 1
      %p204 = scmp.lt.s32.totalorder %s22, 0
      %s205 = scalar_select %p204, %s22, 0
      %p206 = scmp.lt.s32.totalorder %s21, 0
      %s207 = scalar_select %p206, %s21, 0
      %s208 = sadd.s32 %s207, %s205
      %s209 = sadd.s32 %s208, %s203
      %s210 = smul.addr %s209, 4
      %s211 = scalar_lea.vmem %s2, %s210
      %s212 = sadd.s32 %s22, %s23
      %s213 = smul.u32 2, %s212
      %p214 = scmp.lt.s32.totalorder %s20, 1
      %s215 = scalar_select %p214, %s20, 1
      %p216 = scmp.lt.s32.totalorder %s21, 0
      %s217 = scalar_select %p216, %s21, 0
      %p218 = scmp.lt.s32.totalorder %s213, 1
      %s219 = scalar_select %p218, %s213, 1
      %s220 = smul.addr %s217, 2
      %s221 = sadd.s32 %s219, %s220
      %s222 = smul.addr %s215, 2
      %s223 = sadd.s32 %s221, %s222
      %s224 = smul.addr %s223, 4
      %s225 = scalar_lea.vmem %s0, %s224
      %s226 = sadd.s32 %s22, %s23
      %s227 = smul.u32 2, %s226
      %p228 = scmp.lt.s32.totalorder %s20, 1
      %s229 = scalar_select %p228, %s20, 1
      %p230 = scmp.lt.s32.totalorder %s22, 0
      %s231 = scalar_select %p230, %s22, 0
      %p232 = scmp.lt.s32.totalorder %s21, 0
      %s233 = scalar_select %p232, %s21, 0
      %s234 = sadd.s32 %s233, %s231
      %s235 = sadd.s32 %s234, %s229
      %s236 = smul.addr %s235, 4
      %s237 = scalar_lea.vmem %s1, %s236
      %p238 = scmp.lt.s32.totalorder %s20, 1
      %s239 = scalar_select %p238, %s20, 1
      %p240 = scmp.lt.s32.totalorder %s22, 0
      %s241 = scalar_select %p240, %s22, 0
      %p242 = scmp.lt.s32.totalorder %s21, 0
      %s243 = scalar_select %p242, %s21, 0
      %s244 = sadd.s32 %s243, %s241
      %s245 = sadd.s32 %s244, %s239
      %s246 = smul.addr %s245, 4
      %s247 = scalar_lea.vmem %s2, %s246
      %p248 = scmp.eq.s32.totalorder %s23, 0
      // Predicated region
      $region25: #{sbatchnorm2d_forward.2} parent=23 // pred_check
        %p249 = pneg %p248
      $region26: #{sbatchnorm2d_forward.2} parent=23 // pred_check_branch
        %251 = sbr.rel (%p249) target = $region28
      $region27: #{sbatchnorm2d_forward.2} parent=23 // pred_region
        %252 = vst [vmem:[#allocation2] sm:$0xf] 0.0
        %253 = vst [vmem:[#allocation3] sm:$0xf] 0.0
      $region28: #{sbatchnorm2d_forward.2} parent=23 // pred_fallthru
        _
      %v254 = vld [vmem:[%s225] sm:$0xf]
      %v255 = vmul.f32 %v254, %v254
      %v256 = vld [vmem:[%s225 + $0x4] sm:$0xf]
      %v257 = vadd.f32 %v254, %v256
      %v258 = vmul.f32 %v256, %v256
      %v259 = vadd.f32 %v255, %v258
      %v260 = vld [vmem:[#allocation2] sm:$0xf]
      %v261 = vadd.f32 %v260, %v257
      %262 = vst [vmem:[#allocation2] sm:$0xf] %v261
      %v263 = vld [vmem:[#allocation3] sm:$0xf]
      %v264 = vadd.f32 %v263, %v259
      %265 = vst [vmem:[#allocation3] sm:$0xf] %v264
      // Predicated region
      $region29: #{sbatchnorm2d_forward.2} parent=23 // pred_check
        %p266 = pneg %p248
      $region30: #{sbatchnorm2d_forward.2} parent=23 // pred_check_branch
        %268 = sbr.rel (%p266) target = $region32
      $region31: #{sbatchnorm2d_forward.2} parent=23 // pred_region
        %v269 = vld [vmem:[#allocation2] sm:$0xf]
        %vm270 = vcmask 1043456
        %v271 = vsel %vm270, %v269, 0.0
        %272 = vadd.xlane.f32.xlu0 %v271
        %v273 = vpop.xlane.xlu0 %272
        %vm274 = vcmask 3072
        %275 = vst.msk [vmem:[%s237] sm:$0xf] %vm274, %v273
        %v276 = vld [vmem:[#allocation3] sm:$0xf]
        %v277 = vsel %vm270, %v276, 0.0
        %278 = vadd.xlane.f32.xlu0 %v277
        %v279 = vpop.xlane.xlu0 %278
        %280 = vst.msk [vmem:[%s247] sm:$0xf] %vm274, %v279
      $region32: #{sbatchnorm2d_forward.2} parent=23 // pred_fallthru
        _
      %p281 = scmp.lt.s32.totalorder %s20, 1
      %s282 = scalar_select %p281, %s20, 1
      %p283 = scmp.lt.s32.totalorder %s22, 0
      %s284 = scalar_select %p283, %s22, 0
      %p285 = scmp.lt.s32.totalorder %s21, 0
      %s286 = scalar_select %p285, %s21, 0
      %s287 = sadd.s32 %s286, %s284
      %s288 = sadd.s32 %s287, %s282
      %s289 = smul.addr %s288, 4
      %s290 = scalar_lea.vmem %s1, %s289
      %p291 = scmp.lt.s32.totalorder %s20, 1
      %s292 = scalar_select %p291, %s20, 1
      %p293 = scmp.lt.s32.totalorder %s22, 0
      %s294 = scalar_select %p293, %s22, 0
      %p295 = scmp.lt.s32.totalorder %s21, 0
      %s296 = scalar_select %p295, %s21, 0
      %s297 = sadd.s32 %s296, %s294
      %s298 = sadd.s32 %s297, %s292
      %s299 = smul.addr %s298, 4
      %s300 = scalar_lea.vmem %s2, %s299
      // Predicated region
      $region33: #{sbatchnorm2d_forward.2} parent=23 // pred_check
        %p301 = pneg %p94
      $region34: #{sbatchnorm2d_forward.2} parent=23 // pred_check_branch
        %303 = sbr.rel (%p301) target = $region36
      $region35: #{sbatchnorm2d_forward.2} parent=23 // pred_region
        _
      $region36: #{sbatchnorm2d_forward.2} parent=23 // pred_fallthru
        _
      // Predicated region
      $region37: #{sbatchnorm2d_forward.2} parent=23 // pred_check
        %p304 = pneg %p124
      $region38: #{sbatchnorm2d_forward.2} parent=23 // pred_check_branch
        %306 = sbr.rel (%p304) target = $region40
      $region39: #{sbatchnorm2d_forward.2} parent=23 // pred_region
        _
      $region40: #{sbatchnorm2d_forward.2} parent=23 // pred_fallthru
        _
    $region24: #{sbatchnorm2d_forward.2} parent=5 // pred_fallthru
      _
    %p307 = scmp.le.s32.totalorder 2, %s9
    // Predicated region
    $region41: #{sbatchnorm2d_forward.2} parent=5 // pred_check
      %p308 = pneg %p307
    $region42: #{sbatchnorm2d_forward.2} parent=5 // pred_check_branch
      %310 = sbr.rel (%p308) target = $region44
    $region43: #{sbatchnorm2d_forward.2} parent=5 // pred_region
      %s311 = ssub.s32 %s9, 2
      // Predicated region
      $region45: #{sbatchnorm2d_forward.2} parent=43 // pred_check
        %p312 = pneg %p100
      $region46: #{sbatchnorm2d_forward.2} parent=43 // pred_check_branch
        %314 = sbr.rel (%p312) target = $region48
      $region47: #{sbatchnorm2d_forward.2} parent=43 // pred_region
        %p315 = scmp.lt.s32.totalorder %s24, 1
        %s316 = scalar_select %p315, %s24, 1
        %p317 = scmp.lt.s32.totalorder %s26, 0
        %s318 = scalar_select %p317, %s26, 0
        %p319 = scmp.lt.s32.totalorder %s25, 0
        %s320 = scalar_select %p319, %s25, 0
        %s321 = sadd.s32 %s320, %s318
        %s322 = sadd.s32 %s321, %s316
        %s323 = smul.addr %s322, 4
        %s324 = scalar_lea.vmem %s1, %s323
      $region48: #{sbatchnorm2d_forward.2} parent=43 // pred_fallthru
        _
      // Predicated region
      $region49: #{sbatchnorm2d_forward.2} parent=43 // pred_check
        %p325 = pneg %p130
      $region50: #{sbatchnorm2d_forward.2} parent=43 // pred_check_branch
        %327 = sbr.rel (%p325) target = $region52
      $region51: #{sbatchnorm2d_forward.2} parent=43 // pred_region
        %p328 = scmp.lt.s32.totalorder %s24, 1
        %s329 = scalar_select %p328, %s24, 1
        %p330 = scmp.lt.s32.totalorder %s26, 0
        %s331 = scalar_select %p330, %s26, 0
        %p332 = scmp.lt.s32.totalorder %s25, 0
        %s333 = scalar_select %p332, %s25, 0
        %s334 = sadd.s32 %s333, %s331
        %s335 = sadd.s32 %s334, %s329
        %s336 = smul.addr %s335, 4
        %s337 = scalar_lea.vmem %s2, %s336
      $region52: #{sbatchnorm2d_forward.2} parent=43 // pred_fallthru
        _
    $region44: #{sbatchnorm2d_forward.2} parent=5 // pred_fallthru
      _
  $region6: #{sbatchnorm2d_forward.2} parent=0 // loop_footer
    %s13 = sadd.s32 1, %s9
  $region7: #{sbatchnorm2d_forward.2} parent=0 // loop_footer_branch
    %8 = sbr.rel target = $region3
  $region8: #{sbatchnorm2d_forward.2} parent=0 // loop_exit
    _

// kernel: sbatchnorm2d_forward.3
$region0: #{sbatchnorm2d_forward.3}
  #allocation0 [shape = 'u32[]', space=smem, size = 0x4, offset = 0x4, fixed_abs, tag = 'smem constant byte address 0x4 - core index']
  #allocation1 [shape = 'u32[144,128]{1,0:T(1,128)}', space=vmem, size = 0x12000, scoped, tag = 'internal scratch']
  %s0 = inlined_call_operand.vmem [shape: f32[2,4,256], index: 0, kind: input, shape index: {}]
  %s1 = inlined_call_operand.vmem [shape: f32[2,4,256], index: 1, kind: input, shape index: {}]
  %s2 = inlined_call_operand.vmem [shape: f32[4,1], index: 2, kind: input, shape index: {}]
  %s3 = inlined_call_operand.vmem [shape: f32[4,1], index: 3, kind: input, shape index: {}]
  %s4 = inlined_call_operand.vmem [shape: f32[2,4,256], index: 4, kind: output, shape index: {0}]
  %s5 = inlined_call_operand.vmem [shape: f32[2,4,256], index: 5, kind: output, shape index: {1}]
  %6 = xla_tuple %s4, %s5
  %s7 = sld [smem:[#allocation0]]
  $region57: #{sbatchnorm2d_forward.3} parent=0
    _
  %s9 = ssub.s32 1, %s7
  %s10 = scalar_select 0, %s9, %s7
  loop: start=0, step=1, limit=4
  $region2: #{sbatchnorm2d_forward.3} parent=0 // loop_pre_header
    _
  $region3: #{sbatchnorm2d_forward.3} parent=0 // loop_header
    %s12 = sphi 0, %s16
    %p13 = scmp.ge.s32.totalorder %s12, 4
    %s19 = sphi 0, %s31
    %s20 = sphi 0, %s27
    %s21 = sphi 0, %s19
    %s22 = sphi 0, %s20
    %s23 = sphi 0, %s21
    %s24 = sphi 0, %s22
    %s36 = sphi 0, %s38
    %s39 = sphi 0, %s36
    %s40 = sphi 0, %s39
    %s56 = sphi 0, %s40
    %s64 = sphi 0, %s66
    %s67 = sphi 0, %s64
    %s68 = sphi 0, %s67
    %s84 = sphi 0, %s68
    %s88 = sphi 0, %s88
    %s90 = sphi 0, %s88
    %s91 = sphi 0, %s90
    %s105 = sphi 0, %s91
    %s109 = sphi 0, %s109
    %s111 = sphi 0, %s109
    %s112 = sphi 0, %s111
    %s126 = sphi 0, %s112
    %s134 = sphi 0, %s136
    %s137 = sphi 0, %s134
    %s138 = sphi 0, %s137
    %s154 = sphi 0, %s138
    %s162 = sphi 0, %s164
    %s165 = sphi 0, %s162
    %s166 = sphi 0, %s165
    %s182 = sphi 0, %s166
  $region4: #{sbatchnorm2d_forward.3} parent=0 // loop_header_branch
    %15 = sbr.rel (%p13) target = $region8
  $region5: #{sbatchnorm2d_forward.3} parent=0 // loop_body
    %s17 = ssub.s32 %s12, 1
    %s18 = ssub.s32 %s12, 2
    %s25 = sadd.s32 1, %s20
    %p26 = scmp.ge.s32.totalorder %s25, 1
    %s27 = scalar_select %p26, 0, %s25
    %s28 = sadd.s32 1, %s19
    %s29 = scalar_select %p26, %s28, %s19
    %p30 = scmp.ge.s32.totalorder %s29, 2
    %s31 = scalar_select %p30, 0, %s29
    %s32 = ssub.s32 %s19, %s31
    %s33 = ssub.s32 %s20, %s27
    %s34 = sor.u32 %s32, %s33
    %p35 = scmp.eq.s32.totalorder %s34, 0
    %s37 = sadd.s32 %s36, 1
    %s38 = scalar_select %p35, %s36, %s37
    %p41 = pneg %p35
    %p42 = scmp.eq.s32.totalorder %s12, 1
    %p43 = por %p41, %p42
    %p44 = scmp.ne.s32.totalorder %s36, %s39
    %p45 = scmp.eq.s32.totalorder %s12, 0
    %p46 = por %p44, %p45
    %p47 = scmp.ne.s32.totalorder %s36, %s39
    %p48 = scmp.eq.s32.totalorder %s17, 1
    %p49 = por %p47, %p48
    %p50 = scmp.ne.s32.totalorder %s39, %s40
    %p51 = scmp.eq.s32.totalorder %s17, 0
    %p52 = por %p50, %p51
    %p53 = scmp.ne.s32.totalorder %s39, %s40
    %p54 = scmp.eq.s32.totalorder %s18, 1
    %p55 = por %p53, %p54
    %p57 = scmp.ne.s32.totalorder %s40, %s56
    %p58 = scmp.eq.s32.totalorder %s18, 0
    %p59 = por %p57, %p58
    %s60 = ssub.s32 %s19, %s31
    %s61 = ssub.s32 %s20, %s27
    %s62 = sor.u32 %s60, %s61
    %p63 = scmp.eq.s32.totalorder %s62, 0
    %s65 = sadd.s32 %s64, 1
    %s66 = scalar_select %p63, %s64, %s65
    %p69 = pneg %p63
    %p70 = scmp.eq.s32.totalorder %s12, 1
    %p71 = por %p69, %p70
    %p72 = scmp.ne.s32.totalorder %s64, %s67
    %p73 = scmp.eq.s32.totalorder %s12, 0
    %p74 = por %p72, %p73
    %p75 = scmp.ne.s32.totalorder %s64, %s67
    %p76 = scmp.eq.s32.totalorder %s17, 1
    %p77 = por %p75, %p76
    %p78 = scmp.ne.s32.totalorder %s67, %s68
    %p79 = scmp.eq.s32.totalorder %s17, 0
    %p80 = por %p78, %p79
    %p81 = scmp.ne.s32.totalorder %s67, %s68
    %p82 = scmp.eq.s32.totalorder %s18, 1
    %p83 = por %p81, %p82
    %p85 = scmp.ne.s32.totalorder %s68, %s84
    %p86 = scmp.eq.s32.totalorder %s18, 0
    %p87 = por %p85, %p86
    %s89 = sadd.s32 %s88, 1
    %p92 = scmp.eq.s32.totalorder %s12, 1
    %p93 = scmp.ne.s32.totalorder %s88, %s90
    %p94 = scmp.eq.s32.totalorder %s12, 0
    %p95 = por %p93, %p94
    %p96 = scmp.ne.s32.totalorder %s88, %s90
    %p97 = scmp.eq.s32.totalorder %s17, 1
    %p98 = por %p96, %p97
    %p99 = scmp.ne.s32.totalorder %s90, %s91
    %p100 = scmp.eq.s32.totalorder %s17, 0
    %p101 = por %p99, %p100
    %p102 = scmp.ne.s32.totalorder %s90, %s91
    %p103 = scmp.eq.s32.totalorder %s18, 1
    %p104 = por %p102, %p103
    %p106 = scmp.ne.s32.totalorder %s91, %s105
    %p107 = scmp.eq.s32.totalorder %s18, 0
    %p108 = por %p106, %p107
    %s110 = sadd.s32 %s109, 1
    %p113 = scmp.eq.s32.totalorder %s12, 1
    %p114 = scmp.ne.s32.totalorder %s109, %s111
    %p115 = scmp.eq.s32.totalorder %s12, 0
    %p116 = por %p114, %p115
    %p117 = scmp.ne.s32.totalorder %s109, %s111
    %p118 = scmp.eq.s32.totalorder %s17, 1
    %p119 = por %p117, %p118
    %p120 = scmp.ne.s32.totalorder %s111, %s112
    %p121 = scmp.eq.s32.totalorder %s17, 0
    %p122 = por %p120, %p121
    %p123 = scmp.ne.s32.totalorder %s111, %s112
    %p124 = scmp.eq.s32.totalorder %s18, 1
    %p125 = por %p123, %p124
    %p127 = scmp.ne.s32.totalorder %s112, %s126
    %p128 = scmp.eq.s32.totalorder %s18, 0
    %p129 = por %p127, %p128
    %s130 = ssub.s32 %s19, %s31
    %s131 = ssub.s32 %s20, %s27
    %s132 = sor.u32 %s130, %s131
    %p133 = scmp.eq.s32.totalorder %s132, 0
    %s135 = sadd.s32 %s134, 1
    %s136 = scalar_select %p133, %s134, %s135
    %p139 = pneg %p133
    %p140 = scmp.eq.s32.totalorder %s12, 1
    %p141 = por %p139, %p140
    %p142 = scmp.ne.s32.totalorder %s134, %s137
    %p143 = scmp.eq.s32.totalorder %s12, 0
    %p144 = por %p142, %p143
    %p145 = scmp.ne.s32.totalorder %s134, %s137
    %p146 = scmp.eq.s32.totalorder %s17, 1
    %p147 = por %p145, %p146
    %p148 = scmp.ne.s32.totalorder %s137, %s138
    %p149 = scmp.eq.s32.totalorder %s17, 0
    %p150 = por %p148, %p149
    %p151 = scmp.ne.s32.totalorder %s137, %s138
    %p152 = scmp.eq.s32.totalorder %s18, 1
    %p153 = por %p151, %p152
    %p155 = scmp.ne.s32.totalorder %s138, %s154
    %p156 = scmp.eq.s32.totalorder %s18, 0
    %p157 = por %p155, %p156
    %s158 = ssub.s32 %s19, %s31
    %s159 = ssub.s32 %s20, %s27
    %s160 = sor.u32 %s158, %s159
    %p161 = scmp.eq.s32.totalorder %s160, 0
    %s163 = sadd.s32 %s162, 1
    %s164 = scalar_select %p161, %s162, %s163
    %p167 = pneg %p161
    %p168 = scmp.eq.s32.totalorder %s12, 1
    %p169 = por %p167, %p168
    %p170 = scmp.ne.s32.totalorder %s162, %s165
    %p171 = scmp.eq.s32.totalorder %s12, 0
    %p172 = por %p170, %p171
    %p173 = scmp.ne.s32.totalorder %s162, %s165
    %p174 = scmp.eq.s32.totalorder %s17, 1
    %p175 = por %p173, %p174
    %p176 = scmp.ne.s32.totalorder %s165, %s166
    %p177 = scmp.eq.s32.totalorder %s17, 0
    %p178 = por %p176, %p177
    %p179 = scmp.ne.s32.totalorder %s165, %s166
    %p180 = scmp.eq.s32.totalorder %s18, 1
    %p181 = por %p179, %p180
    %p183 = scmp.ne.s32.totalorder %s166, %s182
    %p184 = scmp.eq.s32.totalorder %s18, 0
    %p185 = por %p183, %p184
    %p186 = scmp.le.s32.totalorder 1, %s12
    %p187 = scmp.lt.s32.totalorder %s12, 3
    %p188 = pnand %p186, %p187
    %p189 = pneg %p188
    // Predicated region
    $region9: #{sbatchnorm2d_forward.3} parent=5 // pred_check
      _
    $region10: #{sbatchnorm2d_forward.3} parent=5 // pred_check_branch
      %191 = sbr.rel (%p188) target = $region12
    $region11: #{sbatchnorm2d_forward.3} parent=5 // pred_region
      %s192 = ssub.s32 %s12, 1
      // Predicated region
      $region13: #{sbatchnorm2d_forward.3} parent=11 // pred_check
        %p193 = pneg %p101
      $region14: #{sbatchnorm2d_forward.3} parent=11 // pred_check_branch
        %195 = sbr.rel (%p193) target = $region16
      $region15: #{sbatchnorm2d_forward.3} parent=11 // pred_region
        _
      $region16: #{sbatchnorm2d_forward.3} parent=11 // pred_fallthru
        _
      // Predicated region
      $region17: #{sbatchnorm2d_forward.3} parent=11 // pred_check
        %p196 = pneg %p122
      $region18: #{sbatchnorm2d_forward.3} parent=11 // pred_check_branch
        %198 = sbr.rel (%p196) target = $region20
      $region19: #{sbatchnorm2d_forward.3} parent=11 // pred_region
        _
      $region20: #{sbatchnorm2d_forward.3} parent=11 // pred_fallthru
        _
    $region12: #{sbatchnorm2d_forward.3} parent=5 // pred_fallthru
      _
    %p199 = scmp.lt.s32.totalorder %s12, 2
    // Predicated region
    $region21: #{sbatchnorm2d_forward.3} parent=5 // pred_check
      %p200 = pneg %p199
    $region22: #{sbatchnorm2d_forward.3} parent=5 // pred_check_branch
      %202 = sbr.rel (%p200) target = $region24
    $region23: #{sbatchnorm2d_forward.3} parent=5 // pred_region
      // Predicated region
      $region25: #{sbatchnorm2d_forward.3} parent=23 // pred_check
        %p203 = pneg %p46
      $region26: #{sbatchnorm2d_forward.3} parent=23 // pred_check_branch
        %205 = sbr.rel (%p203) target = $region28
      $region27: #{sbatchnorm2d_forward.3} parent=23 // pred_region
        %s206 = smul.u32 2, %s20
        %p207 = scmp.lt.s32.totalorder %s19, 1
        %s208 = scalar_select %p207, %s19, 1
        %p209 = scmp.lt.s32.totalorder %s206, 1
        %s210 = scalar_select %p209, %s206, 1
        %s211 = smul.addr %s208, 2
        %s212 = sadd.s32 %s210, %s211
        %s213 = smul.addr %s212, 4
        %s214 = scalar_lea.vmem %s0, %s213
        %s215 = smul.u32 2, %s20
      $region28: #{sbatchnorm2d_forward.3} parent=23 // pred_fallthru
        _
      // Predicated region
      $region29: #{sbatchnorm2d_forward.3} parent=23 // pred_check
        %p216 = pneg %p74
      $region30: #{sbatchnorm2d_forward.3} parent=23 // pred_check_branch
        %218 = sbr.rel (%p216) target = $region32
      $region31: #{sbatchnorm2d_forward.3} parent=23 // pred_region
        %s219 = smul.u32 2, %s20
        %p220 = scmp.lt.s32.totalorder %s19, 1
        %s221 = scalar_select %p220, %s19, 1
        %p222 = scmp.lt.s32.totalorder %s219, 1
        %s223 = scalar_select %p222, %s219, 1
        %s224 = smul.addr %s221, 2
        %s225 = sadd.s32 %s223, %s224
        %s226 = smul.addr %s225, 4
        %s227 = scalar_lea.vmem %s1, %s226
        %s228 = smul.u32 2, %s20
      $region32: #{sbatchnorm2d_forward.3} parent=23 // pred_fallthru
        _
    $region24: #{sbatchnorm2d_forward.3} parent=5 // pred_fallthru
      _
    %p229 = scmp.le.s32.totalorder 1, %s12
    %p230 = scmp.lt.s32.totalorder %s12, 3
    %p231 = pnand %p229, %p230
    %p232 = pneg %p231
    // Predicated region
    $region33: #{sbatchnorm2d_forward.3} parent=5 // pred_check
      _
    $region34: #{sbatchnorm2d_forward.3} parent=5 // pred_check_branch
      %234 = sbr.rel (%p231) target = $region36
    $region35: #{sbatchnorm2d_forward.3} parent=5 // pred_region
      %s235 = ssub.s32 %s12, 1
      %s236 = smul.u32 2, %s22
      %p237 = scmp.lt.s32.totalorder %s21, 1
      %s238 = scalar_select %p237, %s21, 1
      %p239 = scmp.lt.s32.totalorder %s236, 1
      %s240 = scalar_select %p239, %s236, 1
      %s241 = smul.addr %s238, 2
      %s242 = sadd.s32 %s240, %s241
      %s243 = smul.addr %s242, 4
      %s244 = scalar_lea.vmem %s0, %s243
      %p245 = pneg %p52
      %p246 = pneg %p49
      %s247 = smul.u32 2, %s22
      %p248 = scmp.lt.s32.totalorder %s21, 1
      %s249 = scalar_select %p248, %s21, 1
      %p250 = scmp.lt.s32.totalorder %s247, 1
      %s251 = scalar_select %p250, %s247, 1
      %s252 = smul.addr %s249, 2
      %s253 = sadd.s32 %s251, %s252
      %s254 = smul.addr %s253, 4
      %s255 = scalar_lea.vmem %s1, %s254
      %p256 = pneg %p80
      %p257 = pneg %p77
      %p258 = pneg %p101
      %p259 = pneg %p98
      %p260 = pneg %p122
      %p261 = pneg %p119
      %p262 = pneg %p150
      %p263 = pneg %p147
      %s264 = smul.u32 2, %s22
      %p265 = scmp.lt.s32.totalorder %s21, 1
      %s266 = scalar_select %p265, %s21, 1
      %p267 = scmp.lt.s32.totalorder %s264, 1
      %s268 = scalar_select %p267, %s264, 1
      %s269 = smul.addr %s266, 2
      %s270 = sadd.s32 %s268, %s269
      %s271 = smul.addr %s270, 4
      %s272 = scalar_lea.vmem %s4, %s271
      %p273 = pneg %p178
      %p274 = pneg %p175
      %s275 = smul.u32 2, %s22
      %p276 = scmp.lt.s32.totalorder %s21, 1
      %s277 = scalar_select %p276, %s21, 1
      %p278 = scmp.lt.s32.totalorder %s275, 1
      %s279 = scalar_select %p278, %s275, 1
      %s280 = smul.addr %s277, 2
      %s281 = sadd.s32 %s279, %s280
      %s282 = smul.addr %s281, 4
      %s283 = scalar_lea.vmem %s5, %s282
      %s284 = smul.u32 2, %s22
      %p285 = scmp.lt.s32.totalorder %s21, 1
      %s286 = scalar_select %p285, %s21, 1
      %p287 = scmp.lt.s32.totalorder %s284, 1
      %s288 = scalar_select %p287, %s284, 1
      %s289 = smul.addr %s286, 2
      %s290 = sadd.s32 %s288, %s289
      %s291 = smul.addr %s290, 4
      %s292 = scalar_lea.vmem %s0, %s291
      %s293 = smul.u32 2, %s22
      %s294 = smul.u32 2, %s22
      %p295 = scmp.lt.s32.totalorder %s21, 1
      %s296 = scalar_select %p295, %s21, 1
      %p297 = scmp.lt.s32.totalorder %s294, 1
      %s298 = scalar_select %p297, %s294, 1
      %s299 = smul.addr %s296, 2
      %s300 = sadd.s32 %s298, %s299
      %s301 = smul.addr %s300, 4
      %s302 = scalar_lea.vmem %s1, %s301
      %s303 = smul.u32 2, %s22
      %s304 = smul.u32 2, %s22
      %p305 = scmp.lt.s32.totalorder %s21, 1
      %s306 = scalar_select %p305, %s21, 1
      %p307 = scmp.lt.s32.totalorder %s304, 1
      %s308 = scalar_select %p307, %s304, 1
      %s309 = smul.addr %s306, 2
      %s310 = sadd.s32 %s308, %s309
      %s311 = smul.addr %s310, 4
      %s312 = scalar_lea.vmem %s4, %s311
      %s313 = smul.u32 2, %s22
      %s314 = smul.u32 2, %s22
      %p315 = scmp.lt.s32.totalorder %s21, 1
      %s316 = scalar_select %p315, %s21, 1
      %p317 = scmp.lt.s32.totalorder %s314, 1
      %s318 = scalar_select %p317, %s314, 1
      %s319 = smul.addr %s316, 2
      %s320 = sadd.s32 %s318, %s319
      %s321 = smul.addr %s320, 4
      %s322 = scalar_lea.vmem %s5, %s321
      %s323 = smul.u32 2, %s22
      %v324 = vld [vmem:[%s2] sm:$0xf]
      %v325 = vld [vmem:[%s3] sm:$0xf]
      %v326 = vld [vmem:[%s292] sm:$0xff]
      %328 = vset.pattern.permute.xlu0 0
      %329 = vperm.xlu0 %328, %v324
      %v330 = vpop.permute.xlu0 %329
      %v332 = vunpack.c.l.s4 839922192
      %v333 = vunpack.c.0.s8 %v332
      %v334 = vlaneseq
      %v335 = vshrl.u32 %v334, 7
      %v336 = vsub.s32 %v333, %v335
      %v337 = vrot.slane %v330, %v336
      %v339 = vmul.f32 %v326, %v337
      %341 = vset.pattern.permute.xlu0 0
      %342 = vperm.xlu0 %341, %v325
      %v343 = vpop.permute.xlu0 %342
      %v345 = vunpack.c.l.s4 839922192
      %v346 = vunpack.c.0.s8 %v345
      %v347 = vlaneseq
      %v348 = vshrl.u32 %v347, 7
      %v349 = vsub.s32 %v346, %v348
      %v350 = vrot.slane %v343, %v349
      %v352 = vadd.f32 %v339, %v350
      %353 = vst [vmem:[%s312] sm:$0xff] %v352
      %v354 = vld [vmem:[%s302] sm:$0xff]
      %v355 = vmul.f32 %v354, %v337
      %356 = vst [vmem:[%s322] sm:$0xff] %v355
      %s357 = smul.u32 2, %s22
      %p358 = scmp.lt.s32.totalorder %s21, 1
      %s359 = scalar_select %p358, %s21, 1
      %p360 = scmp.lt.s32.totalorder %s357, 1
      %s361 = scalar_select %p360, %s357, 1
      %s362 = smul.addr %s359, 2
      %s363 = sadd.s32 %s361, %s362
      %s364 = smul.addr %s363, 4
      %s365 = scalar_lea.vmem %s4, %s364
      %s366 = smul.u32 2, %s22
      %p367 = scmp.lt.s32.totalorder %s21, 1
      %s368 = scalar_select %p367, %s21, 1
      %p369 = scmp.lt.s32.totalorder %s366, 1
      %s370 = scalar_select %p369, %s366, 1
      %s371 = smul.addr %s368, 2
      %s372 = sadd.s32 %s370, %s371
      %s373 = smul.addr %s372, 4
      %s374 = scalar_lea.vmem %s5, %s373
      // Predicated region
      $region37: #{sbatchnorm2d_forward.3} parent=35 // pred_check
        %p375 = pneg %p147
      $region38: #{sbatchnorm2d_forward.3} parent=35 // pred_check_branch
        %377 = sbr.rel (%p375) target = $region40
      $region39: #{sbatchnorm2d_forward.3} parent=35 // pred_region
        %s378 = smul.u32 2, %s22
      $region40: #{sbatchnorm2d_forward.3} parent=35 // pred_fallthru
        _
      // Predicated region
      $region41: #{sbatchnorm2d_forward.3} parent=35 // pred_check
        %p379 = pneg %p175
      $region42: #{sbatchnorm2d_forward.3} parent=35 // pred_check_branch
        %381 = sbr.rel (%p379) target = $region44
      $region43: #{sbatchnorm2d_forward.3} parent=35 // pred_region
        %s382 = smul.u32 2, %s22
      $region44: #{sbatchnorm2d_forward.3} parent=35 // pred_fallthru
        _
    $region36: #{sbatchnorm2d_forward.3} parent=5 // pred_fallthru
      _
    %p383 = scmp.le.s32.totalorder 2, %s12
    // Predicated region
    $region45: #{sbatchnorm2d_forward.3} parent=5 // pred_check
      %p384 = pneg %p383
    $region46: #{sbatchnorm2d_forward.3} parent=5 // pred_check_branch
      %386 = sbr.rel (%p384) target = $region48
    $region47: #{sbatchnorm2d_forward.3} parent=5 // pred_region
      %s387 = ssub.s32 %s12, 2
      // Predicated region
      $region49: #{sbatchnorm2d_forward.3} parent=47 // pred_check
        %p388 = pneg %p153
      $region50: #{sbatchnorm2d_forward.3} parent=47 // pred_check_branch
        %390 = sbr.rel (%p388) target = $region52
      $region51: #{sbatchnorm2d_forward.3} parent=47 // pred_region
        %s391 = smul.u32 2, %s24
        %p392 = scmp.lt.s32.totalorder %s23, 1
        %s393 = scalar_select %p392, %s23, 1
        %p394 = scmp.lt.s32.totalorder %s391, 1
        %s395 = scalar_select %p394, %s391, 1
        %s396 = smul.addr %s393, 2
        %s397 = sadd.s32 %s395, %s396
        %s398 = smul.addr %s397, 4
        %s399 = scalar_lea.vmem %s4, %s398
      $region52: #{sbatchnorm2d_forward.3} parent=47 // pred_fallthru
        _
      // Predicated region
      $region53: #{sbatchnorm2d_forward.3} parent=47 // pred_check
        %p400 = pneg %p181
      $region54: #{sbatchnorm2d_forward.3} parent=47 // pred_check_branch
        %402 = sbr.rel (%p400) target = $region56
      $region55: #{sbatchnorm2d_forward.3} parent=47 // pred_region
        %s403 = smul.u32 2, %s24
        %p404 = scmp.lt.s32.totalorder %s23, 1
        %s405 = scalar_select %p404, %s23, 1
        %p406 = scmp.lt.s32.totalorder %s403, 1
        %s407 = scalar_select %p406, %s403, 1
        %s408 = smul.addr %s405, 2
        %s409 = sadd.s32 %s407, %s408
        %s410 = smul.addr %s409, 4
        %s411 = scalar_lea.vmem %s5, %s410
      $region56: #{sbatchnorm2d_forward.3} parent=47 // pred_fallthru
        _
    $region48: #{sbatchnorm2d_forward.3} parent=5 // pred_fallthru
      _
  $region6: #{sbatchnorm2d_forward.3} parent=0 // loop_footer
    %s16 = sadd.s32 1, %s12
  $region7: #{sbatchnorm2d_forward.3} parent=0 // loop_footer_branch
    %11 = sbr.rel target = $region3
  $region8: #{sbatchnorm2d_forward.3} parent=0 // loop_exit
    _

</llo_original>
